<compile_context>
chip_gen: v7x
topology: tpu7x:2x2x1
jax: 0.10.0
libtpu: 0.0.40
codegen_flags: <defaults>
</compile_context>

<pallas_src>
import math
import numpy as np
import jax
import jax.numpy as jnp
from jax.experimental import pallas as pl
from jax.experimental.pallas import tpu as pltpu


# ----------------------------- linear (row-tiled) ---------------------------

def _linear_kernel(x_ref, w_ref, b_ref, o_ref):
    # y = x @ w + b  (w already stored as (Cin, Cout))
    o_ref[...] = (jnp.dot(x_ref[...], w_ref[...],
                          preferred_element_type=jnp.float32)
                  + b_ref[...]).astype(o_ref.dtype)


def linear(x, w, b, row_tile=512):
    """x: (N, Cin), w: (Cin, Cout), b: (Cout,) -> (N, Cout).

    Rows are tiled across the grid; weights and bias stay VMEM-resident
    (constant index_map), so the kernel pipelines x/out DMA against the MXU.
    """
    n, cin = x.shape
    cout = w.shape[1]
    tr = min(row_tile, n)
    return pl.pallas_call(
        _linear_kernel,
        out_shape=jax.ShapeDtypeStruct((n, cout), x.dtype),
        grid=(pl.cdiv(n, tr),),
        in_specs=[
            pl.BlockSpec((tr, cin), lambda i: (i, 0)),
            pl.BlockSpec((cin, cout), lambda i: (0, 0)),   # resident weight
            pl.BlockSpec((1, cout), lambda i: (0, 0)),     # resident bias
        ],
        out_specs=pl.BlockSpec((tr, cout), lambda i: (i, 0)),
        compiler_params=pltpu.CompilerParams(
            dimension_semantics=("parallel",)),
    )(x, w, b.reshape(1, cout))


# --------------------------- deformable aggregation -------------------------

def _make_deform_kernel(spatial_shapes, level_start, n_heads, head_dim,
                        n_levels, n_points):
    M, D, L, P = n_heads, head_dim, n_levels, n_points

    def kernel(v_ref, loc_ref, attn_ref, out_ref):
        # v_ref:    (Nk, C)            value for this batch element
        # loc_ref:  (TQ, M*L*P*2)      sampling locations, (m, l, p, xy), x first
        # attn_ref: (TQ, M*L*P)        softmaxed attention weights
        # out_ref:  (TQ, C)            lane-dense output (C = M*D)
        loc = loc_ref[...]
        attn = attn_ref[...]
        tq = loc.shape[0]

        outs = [jnp.zeros((tq, D), jnp.float32) for _ in range(M)]

        for l in range(L):
            H, W = spatial_shapes[l]
            start = level_start[l]
            n_l = H * W
            # level-local key-index grid, shared by all heads/points/corners
            kk = jax.lax.broadcasted_iota(jnp.int32, (tq, n_l), 1)

            for m in range(M):
                acc = jnp.zeros((tq, n_l), jnp.float32)
                for p in range(P):
                    base = (m * L + l) * P + p
                    # bilinear grid_sample(align_corners=False, zeros padding)
                    x = loc[:, 2 * base:2 * base + 1] * W - 0.5      # (TQ, 1)
                    y = loc[:, 2 * base + 1:2 * base + 2] * H - 0.5
                    aw = attn[:, base:base + 1]
                    x0 = jnp.floor(x)
                    y0 = jnp.floor(y)
                    lx = x - x0
                    ly = y - y0
                    hx = 1.0 - lx
                    hy = 1.0 - ly
                    xi0 = x0.astype(jnp.int32)
                    yi0 = y0.astype(jnp.int32)

                    contrib = None
                    for yi, xi, wgt in ((yi0, xi0, hy * hx),
                                        (yi0, xi0 + 1, hy * lx),
                                        (yi0 + 1, xi0, ly * hx),
                                        (yi0 + 1, xi0 + 1, ly * lx)):
                        valid = (xi >= 0) & (xi < W) & (yi >= 0) & (yi < H)
                        # level-local index; -1 never matches the iota
                        idx = jnp.where(valid, yi * W + xi, -1)
                        term = jnp.where(kk == idx, wgt * aw, 0.0)
                        contrib = term if contrib is None else contrib + term
                    acc = acc + contrib

                # (TQ, n_l) @ (n_l, D) on the MXU, restricted to this level's
                # keys and this head's channels.
                v_lm = v_ref[start:start + n_l, m * D:(m + 1) * D]
                outs[m] = outs[m] + jnp.dot(acc, v_lm,
                                            preferred_element_type=jnp.float32)

        # single full-width (lane-dense) store of all heads
        out_ref[...] = jnp.concatenate(outs, axis=-1).astype(out_ref.dtype)

    return kernel


def deform_core(value, loc, attn, spatial_shapes, level_start_index,
                n_heads, head_dim, q_tile=128):
    """value: (B, Nk, C); loc: (B, Nq, M*L*P*2); attn: (B, Nq, M*L*P)."""
    B, Nk, C = value.shape
    Nq = loc.shape[1]
    L = len(spatial_shapes)
    LP2 = loc.shape[-1]
    LP = attn.shape[-1]
    P = (LP // n_heads) // L
    TQ = min(q_tile, Nq)

    kernel = _make_deform_kernel(tuple(tuple(s) for s in spatial_shapes),
                                 tuple(level_start_index),
                                 n_heads, head_dim, L, P)

    # NOTE(v7x): at production sizes (Nq~300, Nk~13k, C=256) keep TQ<=128 so the
    # per-level accumulators + the resident value block stay well under the
    # 32 MiB scoped-VMEM default; raise vmem_limit_bytes only if needed.
    return pl.pallas_call(
        kernel,
        out_shape=jax.ShapeDtypeStruct((B, Nq, C), jnp.float32),
        grid=(B, pl.cdiv(Nq, TQ)),
        in_specs=[
            pl.BlockSpec((None, Nk, C), lambda b, q: (b, 0, 0)),   # value resident per b
            pl.BlockSpec((None, TQ, LP2), lambda b, q: (b, q, 0)),
            pl.BlockSpec((None, TQ, LP), lambda b, q: (b, q, 0)),
        ],
        out_specs=pl.BlockSpec((None, TQ, C), lambda b, q: (b, q, 0)),
        compiler_params=pltpu.CompilerParams(
            dimension_semantics=("parallel", "parallel")),
    )(value, loc, attn)


# ----------------------------- parameters -----------------------------------

def init_params(key, d_model, n_heads, n_levels, n_points):
    M, L, P = n_heads, n_levels, n_points
    k1, k2 = jax.random.split(key)

    def xavier(k, fan_in, fan_out):
        lim = math.sqrt(6.0 / (fan_in + fan_out))
        return jax.random.uniform(k, (fan_in, fan_out), jnp.float32, -lim, lim)

    thetas = jnp.arange(M, dtype=jnp.float32) * (2.0 * math.pi / M)
    grid = jnp.stack([jnp.cos(thetas), jnp.sin(thetas)], -1)          # (M, 2)
    grid = grid / jnp.max(jnp.abs(grid), axis=-1, keepdims=True)
    grid = jnp.tile(grid.reshape(M, 1, 1, 2), (1, L, P, 1))
    grid = grid * jnp.arange(1, P + 1, dtype=jnp.float32).reshape(1, 1, P, 1)

    # all weights stored pre-transposed as (Cin, Cout)
    return dict(
        value_proj_w=xavier(k1, d_model, d_model),
        value_proj_b=jnp.zeros((d_model,), jnp.float32),
        sampling_offsets_w=jnp.zeros((d_model, M * L * P * 2), jnp.float32),
        sampling_offsets_b=grid.reshape(-1),
        attention_weights_w=jnp.zeros((d_model, M * L * P), jnp.float32),
        attention_weights_b=jnp.zeros((M * L * P,), jnp.float32),
        output_proj_w=xavier(k2, d_model, d_model),
        output_proj_b=jnp.zeros((d_model,), jnp.float32),
    )


# ----------------------------- forward ---------------------------------------

def deform_attn_forward(params, query, reference_points, input_flatten,
                        spatial_shapes, level_start_index,
                        n_heads, n_levels, n_points,
                        input_padding_mask=None):
    B, Nq, C = query.shape
    _, Nk, _ = input_flatten.shape
    M, L, P = n_heads, n_levels, n_points
    D = C // M
    assert Nk == sum(h * w for h, w in spatial_shapes)

    # projections (row-tiled Pallas matmuls, weights already (Cin, Cout))
    value = linear(input_flatten.reshape(B * Nk, C),
                   params["value_proj_w"], params["value_proj_b"]
                   ).reshape(B, Nk, C)
    if input_padding_mask is not None:
        value = jnp.where(input_padding_mask[..., None], 0.0, value)

    q2 = query.reshape(B * Nq, C)
    offsets = linear(q2, params["sampling_offsets_w"],
                     params["sampling_offsets_b"]).reshape(B, Nq, M, L, P, 2)
    logits = linear(q2, params["attention_weights_w"],
                    params["attention_weights_b"]).reshape(B, Nq, M, L * P)
    attn = jax.nn.softmax(logits, axis=-1)                  # softmax in wrapper

    # sampling locations
    if reference_points.shape[-1] == 2:
        hw = jnp.asarray(spatial_shapes, jnp.float32)            # (L, 2) = (H, W)
        offset_normalizer = jnp.stack([hw[:, 1], hw[:, 0]], -1)  # (W, H)
        sampling_locations = (reference_points[:, :, None, :, None, :]
                              + offsets
                              / offset_normalizer[None, None, None, :, None, :])
    elif reference_points.shape[-1] == 4:
        sampling_locations = (reference_points[:, :, None, :, None, :2]
                              + offsets / P
                              * reference_points[:, :, None, :, None, 2:] * 0.5)
    else:
        raise NotImplementedError

    # deformable aggregation: natural (B, Nq, ...) layouts, no transposes needed
    loc_flat = sampling_locations.reshape(B, Nq, M * L * P * 2)
    attn_flat = attn.reshape(B, Nq, M * L * P)
    core_out = deform_core(value, loc_flat, attn_flat, spatial_shapes,
                           level_start_index, M, D)          # (B, Nq, C)

    output = linear(core_out.reshape(B * Nq, C),
                    params["output_proj_w"], params["output_proj_b"]
                    ).reshape(B, Nq, C)
    attention_weights = attn.reshape(B, Nq, M, L, P)
    return output, sampling_locations, attention_weights


# ----------------------------- main / check ----------------------------------

if __name__ == "__main__":
    d_model, n_heads, n_levels, n_points = 32, 4, 2, 2
    B, Nq = 2, 8
    spatial_shapes = ((8, 8), (4, 4))
    level_start_index = (0, 64)
    Nk = sum(h * w for h, w in spatial_shapes)

    key = jax.random.PRNGKey(0)
    kp, kq, kf, kr = jax.random.split(key, 4)
    params = init_params(kp, d_model, n_heads, n_levels, n_points)
    query = jax.random.normal(kq, (B, Nq, d_model), jnp.float32)
    input_flatten = jax.random.normal(kf, (B, Nk, d_model), jnp.float32)
    reference_points = jax.random.uniform(kr, (B, Nq, n_levels, 2), jnp.float32)

    out, locs, attn = deform_attn_forward(params, query, reference_points,
                                          input_flatten, spatial_shapes,
                                          level_start_index, n_heads,
                                          n_levels, n_points)
    jax.block_until_ready((out, locs, attn))

    # ---- numpy reference of the full forward (same semantics as PyTorch) ----
    M, L, P, D = n_heads, n_levels, n_points, d_model // n_heads
    q_np = np.asarray(query)
    xf_np = np.asarray(input_flatten)
    vw = np.asarray(params["value_proj_w"]); vb = np.asarray(params["value_proj_b"])
    ow = np.asarray(params["output_proj_w"]); ob = np.asarray(params["output_proj_b"])
    sow = np.asarray(params["sampling_offsets_w"]); sob = np.asarray(params["sampling_offsets_b"])
    aww = np.asarray(params["attention_weights_w"]); awb = np.asarray(params["attention_weights_b"])

    value_np = (xf_np @ vw + vb).reshape(B, Nk, M, D)
    off_np = (q_np @ sow + sob).reshape(B, Nq, M, L, P, 2)
    logit_np = (q_np @ aww + awb).reshape(B, Nq, M, L * P)
    ex = np.exp(logit_np - logit_np.max(-1, keepdims=True))
    attn_np = (ex / ex.sum(-1, keepdims=True)).reshape(B, Nq, M, L, P)
    norm = np.array([[w, h] for h, w in spatial_shapes], np.float32)
    loc_np = (np.asarray(reference_points)[:, :, None, :, None, :]
              + off_np / norm[None, None, None, :, None, :])

    core = np.zeros((B, Nq, M, D), np.float64)
    for b in range(B):
        for qq in range(Nq):
            for m in range(M):
                for l in range(L):
                    H, W = spatial_shapes[l]
                    st = level_start_index[l]
                    for p in range(P):
                        xx = loc_np[b, qq, m, l, p, 0] * W - 0.5
                        yy = loc_np[b, qq, m, l, p, 1] * H - 0.5
                        x0 = math.floor(xx); y0 = math.floor(yy)
                        lx = xx - x0; ly = yy - y0
                        aw = attn_np[b, qq, m, l, p]
                        for yi, xi, wgt in ((y0, x0, (1 - ly) * (1 - lx)),
                                            (y0, x0 + 1, (1 - ly) * lx),
                                            (y0 + 1, x0, ly * (1 - lx)),
                                            (y0 + 1, x0 + 1, ly * lx)):
                            if 0 <= xi < W and 0 <= yi < H:
                                core[b, qq, m] += aw * wgt * value_np[b, st + yi * W + xi, m]
    ref_out = core.reshape(B, Nq, M * D) @ ow + ob

    np.testing.assert_allclose(np.asarray(out), ref_out, rtol=2e-4, atol=2e-4)
    np.testing.assert_allclose(np.asarray(attn), attn_np, rtol=1e-5, atol=1e-5)
    np.testing.assert_allclose(np.asarray(locs), loc_np, rtol=1e-5, atol=1e-5)
    print("KERNEL_OK")
</pallas_src>

<mosaic_0001>
module attributes {stable_mosaic.version = 11 : i64} {
  func.func @_linear_kernel(%arg0: i32, %arg1: memref<160x32xf32, #tpu.memory_space<vmem>>, %arg2: memref<32x32xf32, #tpu.memory_space<vmem>>, %arg3: memref<1x32xf32, #tpu.memory_space<vmem>>, %arg4: memref<160x32xf32, #tpu.memory_space<vmem>>) attributes {dimension_semantics = [#tpu.dimension_semantics<parallel>], iteration_bounds = array<i64: 1>, scalar_prefetch = 0 : i64, scratch_operands = 0 : i64, tpu.core_type = #tpu.core_type<tc>, window_params = [{transform_indices = @transform_0, window_bounds = array<i64: 160, 32>}, {pipeline_mode = #tpu.pipeline_mode<synchronous>, transform_indices = @transform_1, window_bounds = array<i64: 32, 32>}, {pipeline_mode = #tpu.pipeline_mode<synchronous>, transform_indices = @transform_2, window_bounds = array<i64: 1, 32>}, {transform_indices = @transform_3, window_bounds = array<i64: 160, 32>}]} {
    %c0 = arith.constant 0 : index
    %c0_0 = arith.constant 0 : index
    %0 = vector.load %arg1[%c0, %c0_0] : memref<160x32xf32, #tpu.memory_space<vmem>>, vector<160x32xf32>
    %c0_1 = arith.constant 0 : index
    %c0_2 = arith.constant 0 : index
    %1 = vector.load %arg2[%c0_1, %c0_2] : memref<32x32xf32, #tpu.memory_space<vmem>>, vector<32x32xf32>
    %cst = arith.constant dense<0.000000e+00> : vector<160x32xf32>
    %2 = tpu.matmul %0, %1, %cst {dimension_numbers = #tpu.dot_dimension_numbers<[1], [0], [0], [1], [0, 0, 1, 1], [], []>} : vector<160x32xf32>, vector<32x32xf32>, vector<160x32xf32> -> vector<160x32xf32>
    %c0_3 = arith.constant 0 : index
    %c0_4 = arith.constant 0 : index
    %3 = vector.load %arg3[%c0_3, %c0_4] : memref<1x32xf32, #tpu.memory_space<vmem>>, vector<1x32xf32>
    %4 = vector.broadcast %3 : vector<1x32xf32> to vector<160x32xf32>
    %5 = arith.addf %2, %4 : vector<160x32xf32>
    %c0_5 = arith.constant 0 : index
    %c0_6 = arith.constant 0 : index
    %6 = vector.load %arg4[%c0_5, %c0_6] : memref<160x32xf32, #tpu.memory_space<vmem>>, vector<160x32xf32>
    tpu.vector_store %arg4[%c0_5, %c0_6], %5 {strides = array<i32>} : memref<160x32xf32, #tpu.memory_space<vmem>>, vector<160x32xf32>,
    return
  }
  func.func @transform_0(%arg0: i32) -> (i32, i32) {
    %c0_i32 = arith.constant 0 : i32
    %c0_i32_0 = arith.constant 0 : i32
    return %arg0, %c0_i32 : i32, i32
  }
  func.func @transform_1(%arg0: i32) -> (i32, i32) {
    %c0_i32 = arith.constant 0 : i32
    %c0_i32_0 = arith.constant 0 : i32
    %c0_i32_1 = arith.constant 0 : i32
    return %c0_i32, %c0_i32_0 : i32, i32
  }
  func.func @transform_2(%arg0: i32) -> (i32, i32) {
    %c0_i32 = arith.constant 0 : i32
    %c0_i32_0 = arith.constant 0 : i32
    %c0_i32_1 = arith.constant 0 : i32
    return %c0_i32, %c0_i32_0 : i32, i32
  }
  func.func @transform_3(%arg0: i32) -> (i32, i32) {
    %c0_i32 = arith.constant 0 : i32
    %c0_i32_0 = arith.constant 0 : i32
    return %arg0, %c0_i32 : i32, i32
  }
}

</mosaic_0001>

<llo_original>
// kernel: tpu_custom_call.1
$region0: #{tpu_custom_call.1}
  #allocation0 [shape = 'u32[]', space=smem, size = 0x4, offset = 0x4, fixed_abs, tag = 'smem constant byte address 0x4 - core index']
  #allocation1 [shape = 'u32[144,128]{1,0:T(1,128)}', space=vmem, size = 0x12000, scoped, tag = 'internal scratch']
  %s0 = inlined_call_operand.vmem [shape: f32[160,32], index: 0, kind: input, shape index: {}]
  %s1 = inlined_call_operand.vmem [shape: f32[32,32], index: 1, kind: input, shape index: {}]
  %s2 = inlined_call_operand.vmem [shape: f32[1,32], index: 2, kind: input, shape index: {}]
  %s3 = inlined_call_operand.vmem [shape: f32[160,32], index: 3, kind: output, shape index: {}]
  %s4 = sld [smem:[#allocation0]]
  $region22: #{tpu_custom_call.1} parent=0
    _
  %s6 = ssub.s32 1, %s4
  %s7 = scalar_select 0, %s6, %s4
  // Predicated region
  $region2: #{tpu_custom_call.1} parent=0 // pred_check
    _
  $region3: #{tpu_custom_call.1} parent=0 // pred_check_branch
    %9 = sbr.rel (0) target = $region5
  $region4: #{tpu_custom_call.1} parent=0 // pred_region
    _
  $region5: #{tpu_custom_call.1} parent=0 // pred_fallthru
    _
  // Predicated region
  $region6: #{tpu_custom_call.1} parent=0 // pred_check
    _
  $region7: #{tpu_custom_call.1} parent=0 // pred_check_branch
    %11 = sbr.rel (0) target = $region9
  $region8: #{tpu_custom_call.1} parent=0 // pred_region
    _
  $region9: #{tpu_custom_call.1} parent=0 // pred_fallthru
    _
  // Predicated region
  $region10: #{tpu_custom_call.1} parent=0 // pred_check
    _
  $region11: #{tpu_custom_call.1} parent=0 // pred_check_branch
    %13 = sbr.rel (0) target = $region13
  $region12: #{tpu_custom_call.1} parent=0 // pred_region
    _
  $region13: #{tpu_custom_call.1} parent=0 // pred_fallthru
    _
  %v14 = vld [vmem:[%s0] sm:$0xff]
  %v15 = vld [vmem:[%s0 + $0x8] sm:$0xff]
  %v16 = vld [vmem:[%s0 + $0x10] sm:$0xff]
  %v17 = vld [vmem:[%s0 + $0x18] sm:$0xff]
  %v18 = vld [vmem:[%s0 + $0x20] sm:$0xff]
  %v19 = vld [vmem:[%s0 + $0x28] sm:$0xff]
  %v20 = vld [vmem:[%s0 + $0x30] sm:$0xff]
  %v21 = vld [vmem:[%s0 + $0x38] sm:$0xff]
  %v22 = vld [vmem:[%s0 + $0x40] sm:$0xff]
  %v23 = vld [vmem:[%s0 + $0x48] sm:$0xff]
  %v24 = vld [vmem:[%s0 + $0x50] sm:$0xff]
  %v25 = vld [vmem:[%s0 + $0x58] sm:$0xff]
  %v26 = vld [vmem:[%s0 + $0x60] sm:$0xff]
  %v27 = vld [vmem:[%s0 + $0x68] sm:$0xff]
  %v28 = vld [vmem:[%s0 + $0x70] sm:$0xff]
  %v29 = vld [vmem:[%s0 + $0x78] sm:$0xff]
  %v30 = vld [vmem:[%s0 + $0x80] sm:$0xff]
  %v31 = vld [vmem:[%s0 + $0x88] sm:$0xff]
  %v32 = vld [vmem:[%s0 + $0x90] sm:$0xff]
  %v33 = vld [vmem:[%s0 + $0x98] sm:$0xff]
  %v34 = vld [vmem:[%s1] sm:$0xff]
  %v35 = vld [vmem:[%s1 + $0x8] sm:$0xff]
  %v36 = vld [vmem:[%s1 + $0x10] sm:$0xff]
  %v37 = vld [vmem:[%s1 + $0x18] sm:$0xff]
  %v38 = vld [vmem:[%s2] sm:$0x1]
  %v40 = vlaneseq
  %v41 = vshrl.u32 %v40, 7
  %v42 = vsub.s32 0, %v41
  %v43 = vrot.slane %v38, %v42
  %vm45 = vcmask 261120
  %v47 = vsel %vm45, %v14, 0
  %v50 = vsel %vm45, %v15, 0
  %v53 = vsel %vm45, %v16, 0
  %v56 = vsel %vm45, %v17, 0
  %v59 = vsel %vm45, %v18, 0
  %v62 = vsel %vm45, %v19, 0
  %v65 = vsel %vm45, %v20, 0
  %v68 = vsel %vm45, %v21, 0
  %v71 = vsel %vm45, %v22, 0
  %v74 = vsel %vm45, %v23, 0
  %v77 = vsel %vm45, %v24, 0
  %v80 = vsel %vm45, %v25, 0
  %v83 = vsel %vm45, %v26, 0
  %v86 = vsel %vm45, %v27, 0
  %v89 = vsel %vm45, %v28, 0
  %v92 = vsel %vm45, %v29, 0
  %v95 = vsel %vm45, %v30, 0
  %v98 = vsel %vm45, %v31, 0
  %v101 = vsel %vm45, %v32, 0
  %v104 = vsel %vm45, %v33, 0
  %106 = vmatprep.subr.mxu0 0.0
  %107 = vmatpush1.msra.mxu0 %v34
  %108 = vmatprep.subr.mxu0 0.0
  %109 = vmatpush1.msra.mxu0 %v35
  %110 = vmatprep.subr.mxu0 0.0
  %111 = vmatpush1.msra.mxu0 %v36
  %112 = vmatprep.subr.mxu0 0.0
  %113 = vmatpush1.msra.mxu0 %v37
  %114 = vmatprep.subr.mxu0 0.0
  %115 = vmatpush1.msra.mxu0 0.0
  %116 = vmatprep.subr.mxu0 0.0
  %117 = vmatpush1.msra.mxu0 0.0
  %118 = vmatprep.subr.mxu0 0.0
  %119 = vmatpush1.msra.mxu0 0.0
  %120 = vmatprep.subr.mxu0 0.0
  %121 = vmatpush1.msra.mxu0 0.0
  %122 = vmatprep.subr.mxu0 0.0
  %123 = vmatpush1.msra.mxu0 0.0
  %124 = vmatprep.subr.mxu0 0.0
  %125 = vmatpush1.msra.mxu0 0.0
  %126 = vmatprep.subr.mxu0 0.0
  %127 = vmatpush1.msra.mxu0 0.0
  %128 = vmatprep.subr.mxu0 0.0
  %129 = vmatpush1.msra.mxu0 0.0
  %130 = vmatprep.subr.mxu0 0.0
  %131 = vmatpush1.msra.mxu0 0.0
  %132 = vmatprep.subr.mxu0 0.0
  %133 = vmatpush1.msra.mxu0 0.0
  %134 = vmatprep.subr.mxu0 0.0
  %135 = vmatpush1.msra.mxu0 0.0
  %136 = vmatprep.subr.mxu0 0.0
  %137 = vmatpush1.msra.mxu0 0.0
  %138 = vmatprep.subr.mxu0 0.0
  %139 = vmatpush1.msra.mxu0 0.0
  %140 = vmatprep.subr.mxu0 0.0
  %141 = vmatpush1.msra.mxu0 0.0
  %142 = vmatprep.subr.mxu0 0.0
  %143 = vmatpush1.msra.mxu0 0.0
  %144 = vmatprep.subr.mxu0 0.0
  %145 = vmatpush1.msra.mxu0 0.0
  %146 = vmatprep.subr.mxu0 0.0
  %147 = vmatpush1.msra.mxu0 0.0
  %148 = vmatprep.subr.mxu0 0.0
  %149 = vmatpush1.msra.mxu0 0.0
  %150 = vmatprep.subr.mxu0 0.0
  %151 = vmatpush1.msra.mxu0 0.0
  %152 = vmatprep.subr.mxu0 0.0
  %153 = vmatpush1.msra.mxu0 0.0
  %154 = vmatprep.subr.mxu0 0.0
  %155 = vmatpush1.msra.mxu0 0.0
  %156 = vmatprep.subr.mxu0 0.0
  %157 = vmatpush1.msra.mxu0 0.0
  %158 = vmatprep.subr.mxu0 0.0
  %159 = vmatpush1.msra.mxu0 0.0
  %160 = vmatprep.subr.mxu0 0.0
  %161 = vmatpush1.msra.mxu0 0.0
  %162 = vmatprep.subr.mxu0 0.0
  %163 = vmatpush1.msra.mxu0 0.0
  %164 = vmatprep.subr.mxu0 0.0
  %165 = vmatpush1.msra.mxu0 0.0
  %166 = vmatprep.subr.mxu0 0.0
  %167 = vmatpush1.msra.mxu0 0.0
  %168 = vmatprep.subr.mxu0 0.0
  %169 = vmatpush1.msra.mxu0 0.0
  %170 = vmatprep.mubr.f32.mxu0 0.0
  %171 = vmatmul.mubr.f32.gmra.mrb[0].mxu0 %v47
  %v172 = vpop.f32.mrb[0].mxu0
  %v173 = vadd.f32 %v43, %v172
  %v174 = vpop.f32.mrb[0].mxu0
  %175 = vmatprep.mubr.f32.mxu0 0.0
  %176 = vmatmul.mubr.f32.gmra.mrb[0].mxu0 %v50
  %v177 = vpop.f32.mrb[0].mxu0
  %v178 = vadd.f32 %v43, %v177
  %v179 = vpop.f32.mrb[0].mxu0
  %180 = vmatprep.mubr.f32.mxu0 0.0
  %181 = vmatmul.mubr.f32.gmra.mrb[0].mxu0 %v53
  %v182 = vpop.f32.mrb[0].mxu0
  %v183 = vadd.f32 %v43, %v182
  %v184 = vpop.f32.mrb[0].mxu0
  %185 = vmatprep.mubr.f32.mxu0 0.0
  %186 = vmatmul.mubr.f32.gmra.mrb[0].mxu0 %v56
  %v187 = vpop.f32.mrb[0].mxu0
  %v188 = vadd.f32 %v43, %v187
  %v189 = vpop.f32.mrb[0].mxu0
  %190 = vmatprep.mubr.f32.mxu0 0.0
  %191 = vmatmul.mubr.f32.gmra.mrb[0].mxu0 %v59
  %v192 = vpop.f32.mrb[0].mxu0
  %v193 = vadd.f32 %v43, %v192
  %v194 = vpop.f32.mrb[0].mxu0
  %195 = vmatprep.mubr.f32.mxu0 0.0
  %196 = vmatmul.mubr.f32.gmra.mrb[0].mxu0 %v62
  %v197 = vpop.f32.mrb[0].mxu0
  %v198 = vadd.f32 %v43, %v197
  %v199 = vpop.f32.mrb[0].mxu0
  %200 = vmatprep.mubr.f32.mxu0 0.0
  %201 = vmatmul.mubr.f32.gmra.mrb[0].mxu0 %v65
  %v202 = vpop.f32.mrb[0].mxu0
  %v203 = vadd.f32 %v43, %v202
  %v204 = vpop.f32.mrb[0].mxu0
  %205 = vmatprep.mubr.f32.mxu0 0.0
  %206 = vmatmul.mubr.f32.gmra.mrb[0].mxu0 %v68
  %v207 = vpop.f32.mrb[0].mxu0
  %v208 = vadd.f32 %v43, %v207
  %v209 = vpop.f32.mrb[0].mxu0
  %210 = vmatprep.mubr.f32.mxu0 0.0
  %211 = vmatmul.mubr.f32.gmra.mrb[0].mxu0 %v71
  %v212 = vpop.f32.mrb[0].mxu0
  %v213 = vadd.f32 %v43, %v212
  %v214 = vpop.f32.mrb[0].mxu0
  %215 = vmatprep.mubr.f32.mxu0 0.0
  %216 = vmatmul.mubr.f32.gmra.mrb[0].mxu0 %v74
  %v217 = vpop.f32.mrb[0].mxu0
  %v218 = vadd.f32 %v43, %v217
  %v219 = vpop.f32.mrb[0].mxu0
  %220 = vmatprep.mubr.f32.mxu0 0.0
  %221 = vmatmul.mubr.f32.gmra.mrb[0].mxu0 %v77
  %v222 = vpop.f32.mrb[0].mxu0
  %v223 = vadd.f32 %v43, %v222
  %v224 = vpop.f32.mrb[0].mxu0
  %225 = vmatprep.mubr.f32.mxu0 0.0
  %226 = vmatmul.mubr.f32.gmra.mrb[0].mxu0 %v80
  %v227 = vpop.f32.mrb[0].mxu0
  %v228 = vadd.f32 %v43, %v227
  %v229 = vpop.f32.mrb[0].mxu0
  %230 = vmatprep.mubr.f32.mxu0 0.0
  %231 = vmatmul.mubr.f32.gmra.mrb[0].mxu0 %v83
  %v232 = vpop.f32.mrb[0].mxu0
  %v233 = vadd.f32 %v43, %v232
  %v234 = vpop.f32.mrb[0].mxu0
  %235 = vmatprep.mubr.f32.mxu0 0.0
  %236 = vmatmul.mubr.f32.gmra.mrb[0].mxu0 %v86
  %v237 = vpop.f32.mrb[0].mxu0
  %v238 = vadd.f32 %v43, %v237
  %v239 = vpop.f32.mrb[0].mxu0
  %240 = vmatprep.mubr.f32.mxu0 0.0
  %241 = vmatmul.mubr.f32.gmra.mrb[0].mxu0 %v89
  %v242 = vpop.f32.mrb[0].mxu0
  %v243 = vadd.f32 %v43, %v242
  %v244 = vpop.f32.mrb[0].mxu0
  %245 = vmatprep.mubr.f32.mxu0 0.0
  %246 = vmatmul.mubr.f32.gmra.mrb[0].mxu0 %v92
  %v247 = vpop.f32.mrb[0].mxu0
  %v248 = vadd.f32 %v43, %v247
  %v249 = vpop.f32.mrb[0].mxu0
  %250 = vmatprep.mubr.f32.mxu0 0.0
  %251 = vmatmul.mubr.f32.gmra.mrb[0].mxu0 %v95
  %v252 = vpop.f32.mrb[0].mxu0
  %v253 = vadd.f32 %v43, %v252
  %v254 = vpop.f32.mrb[0].mxu0
  %255 = vmatprep.mubr.f32.mxu0 0.0
  %256 = vmatmul.mubr.f32.gmra.mrb[0].mxu0 %v98
  %v257 = vpop.f32.mrb[0].mxu0
  %v258 = vadd.f32 %v43, %v257
  %v259 = vpop.f32.mrb[0].mxu0
  %260 = vmatprep.mubr.f32.mxu0 0.0
  %261 = vmatmul.mubr.f32.gmra.mrb[0].mxu0 %v101
  %v262 = vpop.f32.mrb[0].mxu0
  %v263 = vadd.f32 %v43, %v262
  %v264 = vpop.f32.mrb[0].mxu0
  %265 = vmatprep.mubr.f32.mxu0 0.0
  %266 = vmatmul.mubr.f32.gmra.mrb[0].mxu0 %v104
  %v267 = vpop.f32.mrb[0].mxu0
  %v268 = vadd.f32 %v43, %v267
  %v269 = vpop.f32.mrb[0].mxu0
  %270 = vdwg.mxu0
  %271 = vst.msk [vmem:[%s3] sm:$0xff] %vm45, %v173
  %272 = vst.msk [vmem:[%s3 + $0x8] sm:$0xff] %vm45, %v178
  %273 = vst.msk [vmem:[%s3 + $0x10] sm:$0xff] %vm45, %v183
  %274 = vst.msk [vmem:[%s3 + $0x18] sm:$0xff] %vm45, %v188
  %275 = vst.msk [vmem:[%s3 + $0x20] sm:$0xff] %vm45, %v193
  %276 = vst.msk [vmem:[%s3 + $0x28] sm:$0xff] %vm45, %v198
  %277 = vst.msk [vmem:[%s3 + $0x30] sm:$0xff] %vm45, %v203
  %278 = vst.msk [vmem:[%s3 + $0x38] sm:$0xff] %vm45, %v208
  %279 = vst.msk [vmem:[%s3 + $0x40] sm:$0xff] %vm45, %v213
  %280 = vst.msk [vmem:[%s3 + $0x48] sm:$0xff] %vm45, %v218
  %281 = vst.msk [vmem:[%s3 + $0x50] sm:$0xff] %vm45, %v223
  %282 = vst.msk [vmem:[%s3 + $0x58] sm:$0xff] %vm45, %v228
  %283 = vst.msk [vmem:[%s3 + $0x60] sm:$0xff] %vm45, %v233
  %284 = vst.msk [vmem:[%s3 + $0x68] sm:$0xff] %vm45, %v238
  %285 = vst.msk [vmem:[%s3 + $0x70] sm:$0xff] %vm45, %v243
  %286 = vst.msk [vmem:[%s3 + $0x78] sm:$0xff] %vm45, %v248
  %287 = vst.msk [vmem:[%s3 + $0x80] sm:$0xff] %vm45, %v253
  %288 = vst.msk [vmem:[%s3 + $0x88] sm:$0xff] %vm45, %v258
  %289 = vst.msk [vmem:[%s3 + $0x90] sm:$0xff] %vm45, %v263
  %290 = vst.msk [vmem:[%s3 + $0x98] sm:$0xff] %vm45, %v268
  // Predicated region
  $region14: #{tpu_custom_call.1} parent=0 // pred_check
    _
  $region15: #{tpu_custom_call.1} parent=0 // pred_check_branch
    %292 = sbr.rel (0) target = $region17
  $region16: #{tpu_custom_call.1} parent=0 // pred_region
    _
  $region17: #{tpu_custom_call.1} parent=0 // pred_fallthru
    _
  // Predicated region
  $region18: #{tpu_custom_call.1} parent=0 // pred_check
    _
  $region19: #{tpu_custom_call.1} parent=0 // pred_check_branch
    %294 = sbr.rel (0) target = $region21
  $region20: #{tpu_custom_call.1} parent=0 // pred_region
    _
  $region21: #{tpu_custom_call.1} parent=0 // pred_fallthru
    _

</llo_original>
